<compile_context>
chip_gen: v7x
topology: tpu7x:2x2x1
jax: 0.10.0
libtpu: 0.0.40
codegen_flags: <defaults>
</compile_context>

<pallas_src>
import math
from functools import partial

import jax
import jax.numpy as jnp
from jax.experimental import pallas as pl
from jax.experimental.pallas import tpu as pltpu


def _round_up(x: int, m: int) -> int:
    return ((x + m - 1) // m) * m


def _pick_tile(dim: int, want: int, align: int):
    """Tile size: multiple of `align`, <= want (clamped), and divides the padded dim."""
    padded = _round_up(dim, align)
    t = _round_up(min(want, padded), align)
    while padded % t:
        t -= align
    return t, padded


def _split_tile_for_two_cores(padded: int, tile: int, align: int) -> int:
    """If this axis currently has a single tile, try splitting it (v7x has 2 TensorCores)."""
    if padded // tile >= 2 or padded < 2 * align:
        return tile
    t = (padded // 2) // align * align
    while t >= align and padded % t:
        t -= align
    return t if t >= align else tile


def _linear_kernel(x_ref, w_ref, b_ref, o_ref, acc_ref):
    # x_ref: (tm, tk)  w_ref: (tk, tn) [pre-transposed W]  b_ref: (1, tn)  o_ref: (tm, tn)
    k = pl.program_id(2)
    prod = jnp.dot(x_ref[...], w_ref[...], preferred_element_type=jnp.float32)

    @pl.when(k == 0)
    def _():
        acc_ref[...] = prod          # first partial product: no separate zero-init pass

    @pl.when(k > 0)
    def _():
        acc_ref[...] += prod

    @pl.when(k == pl.num_programs(2) - 1)
    def _():
        # Bias added once (f32) on the final K step, then cast to the output dtype.
        o_ref[...] = (acc_ref[...] + b_ref[...].astype(jnp.float32)).astype(o_ref.dtype)


@partial(jax.jit, static_argnames=("tm", "tn", "tk", "out_dtype", "vmem_limit"))
def _linear_pallas(x2d, wT, b2d, *, tm, tn, tk, out_dtype, vmem_limit):
    Mp, Kp = x2d.shape
    Np = wT.shape[1]
    grid = (Mp // tm, Np // tn, Kp // tk)

    cost = pl.CostEstimate(
        flops=2 * Mp * Kp * Np,
        transcendentals=0,
        bytes_accessed=(
            x2d.size * x2d.dtype.itemsize * grid[1]        # x re-fetched once per N tile
            + wT.size * wT.dtype.itemsize * grid[0]        # W re-fetched once per M tile
            + b2d.size * b2d.dtype.itemsize
            + Mp * Np * jnp.dtype(out_dtype).itemsize
        ),
    )

    return pl.pallas_call(
        _linear_kernel,
        out_shape=jax.ShapeDtypeStruct((Mp, Np), out_dtype),
        grid_spec=pltpu.PrefetchScalarGridSpec(
            num_scalar_prefetch=0,
            grid=grid,
            in_specs=[
                pl.BlockSpec((tm, tk), lambda i, j, k: (i, k)),   # x tile
                # If profiling ever shows the W DMA exposed (mostly v5e), add
                # pipeline_mode=pl.Buffered(3) here and re-check the VMEM budget.
                pl.BlockSpec((tk, tn), lambda i, j, k: (k, j)),   # Wᵀ tile (K, N)
                pl.BlockSpec((1, tn), lambda i, j, k: (0, j)),    # bias tile
            ],
            out_specs=pl.BlockSpec((tm, tn), lambda i, j, k: (i, j)),
            scratch_shapes=[pltpu.VMEM((tm, tn), jnp.float32)],
        ),
        compiler_params=pltpu.CompilerParams(
            dimension_semantics=("parallel", "parallel", "arbitrary"),
            vmem_limit_bytes=vmem_limit,
        ),
        cost_estimate=cost,
    )(x2d, wT, b2d)


class EmbeddingLayer:
    """Pallas-backed nn.Linear(input_dim, embedding_dim): y = x @ W.T + b."""

    _FALLBACK_MNK = 1 << 18  # tiny problems: XLA dot beats kernel + padding overhead

    def __init__(self, weight, bias, *, compute_dtype=jnp.bfloat16,
                 tm=512, tn=512, tk=1024):
        N, K = weight.shape          # (embedding_dim, input_dim)
        self.N, self.K = N, K
        self.compute_dtype = jnp.dtype(compute_dtype)
        # Sublane alignment for the compute dtype: (8,128) f32 / (16,128) bf16 / (32,128) 8-bit.
        self.m_align = 8 * (4 // self.compute_dtype.itemsize)
        self.tm_want = _round_up(tm, self.m_align)

        # Tile choices along N / K (independent of M, so fixed at init).
        self.tn, self.Np = _pick_tile(N, tn, 128)
        self.tk, self.Kp = _pick_tile(K, tk, 128)

        # One-time parameter prep (out of the hot path): transpose to (K, N), pad, cast.
        wT = jnp.asarray(weight).T
        if (self.Kp, self.Np) != (K, N):
            wT = jnp.pad(wT, ((0, self.Kp - K), (0, self.Np - N)))
        self.wT = wT.astype(self.compute_dtype)

        b2d = jnp.asarray(bias, dtype=jnp.float32).reshape(1, N)
        if self.Np != N:
            b2d = jnp.pad(b2d, ((0, 0), (0, self.Np - N)))
        self.b2d = b2d

        # Originals kept for the tiny-shape full-precision XLA fallback.
        self._weight = jnp.asarray(weight)
        self._bias = jnp.asarray(bias)

    def __call__(self, x, *, force_pallas: bool = False):
        lead = x.shape[:-1]
        K = x.shape[-1]
        assert K == self.K, f"expected last dim {self.K}, got {K}"
        M = math.prod(lead) if lead else 1
        out_dtype = jnp.dtype(x.dtype)

        if not force_pallas and M * self.N * self.K < self._FALLBACK_MNK:
            # Padding K/N up to 128 plus fixed pallas_call overhead dominates here.
            y = jnp.einsum("...k,nk->...n", x, self._weight) + self._bias
            return y.astype(out_dtype)

        tm, Mp = _pick_tile(M, self.tm_want, self.m_align)
        tn = self.tn
        # Keep >= 2 parallel output tiles where possible (feeds both v7x TensorCores).
        if (Mp // tm) * (self.Np // tn) < 2:
            tm2 = _split_tile_for_two_cores(Mp, tm, self.m_align)
            if tm2 != tm:
                tm = tm2
            else:
                tn = _split_tile_for_two_cores(self.Np, tn, 128)

        # Per-call work on x only: cast to the MXU compute dtype and pad to tile multiples.
        x2d = x.reshape(M, K).astype(self.compute_dtype)
        if (Mp, self.Kp) != (M, K):
            x2d = jnp.pad(x2d, ((0, Mp - M), (0, self.Kp - K)))

        # Explicit VMEM budget (double-buffered inputs/outputs + accumulator scratch),
        # capped below v7x's 64 MiB physical VMEM; also lifts v5e's 16 MiB scoped default.
        cbytes = self.compute_dtype.itemsize
        obytes = out_dtype.itemsize
        vmem_needed = (2 * (tm * self.tk * cbytes + self.tk * tn * cbytes
                            + tn * 4 + tm * tn * obytes)
                       + tm * tn * 4)
        vmem_limit = int(min(max(vmem_needed + (8 << 20), 16 << 20), 56 << 20))

        y2d = _linear_pallas(
            x2d, self.wT, self.b2d,
            tm=tm, tn=tn, tk=self.tk, out_dtype=out_dtype, vmem_limit=vmem_limit,
        )
        return y2d[:M, :self.N].reshape(*lead, self.N)


if __name__ == "__main__":
    key = jax.random.PRNGKey(0)
    k_x, k_w, k_b, k_x2, k_w2, k_b2 = jax.random.split(key, 6)

    # --- Small, module-implied shape: nn.Linear(32, 64) on (batch=2, seq=8, 32) ---
    batch, seq, input_dim, embedding_dim = 2, 8, 32, 64
    x = jax.random.normal(k_x, (batch, seq, input_dim), dtype=jnp.float32)
    bound = 1.0 / math.sqrt(input_dim)
    weight = jax.random.uniform(k_w, (embedding_dim, input_dim),
                                minval=-bound, maxval=bound, dtype=jnp.float32)
    bias = jax.random.uniform(k_b, (embedding_dim,),
                              minval=-bound, maxval=bound, dtype=jnp.float32)

    layer = EmbeddingLayer(weight, bias)

    y_ref_f32 = jnp.einsum("bsk,nk->bsn", x, weight) + bias
    y_ref_bf16 = jnp.einsum("bsk,nk->bsn",
                            x.astype(jnp.bfloat16), weight.astype(jnp.bfloat16),
                            preferred_element_type=jnp.float32) + bias

    # Auto path: tiny problem -> full-precision XLA fallback (exact).
    y_auto = jax.block_until_ready(layer(x))
    assert y_auto.shape == (batch, seq, embedding_dim)
    assert jnp.allclose(y_auto, y_ref_f32, atol=1e-5, rtol=1e-5)

    # Forced Pallas path on the same small shape (bf16 MXU inputs, f32 accumulation).
    y_pl = jax.block_until_ready(layer(x, force_pallas=True))
    assert y_pl.shape == (batch, seq, embedding_dim)
    assert jnp.allclose(y_pl, y_ref_bf16, atol=2e-3, rtol=2e-3)

    # --- Larger shape exercising multiple output tiles and the padded K/N paths ---
    batch2, seq2, in2, out2 = 4, 128, 384, 640
    x2 = jax.random.normal(k_x2, (batch2, seq2, in2), dtype=jnp.float32)
    bound2 = 1.0 / math.sqrt(in2)
    weight2 = jax.random.uniform(k_w2, (out2, in2),
                                 minval=-bound2, maxval=bound2, dtype=jnp.float32)
    bias2 = jax.random.uniform(k_b2, (out2,),
                               minval=-bound2, maxval=bound2, dtype=jnp.float32)

    layer2 = EmbeddingLayer(weight2, bias2)
    y2 = jax.block_until_ready(layer2(x2))           # auto path -> Pallas kernel
    y2_ref = jnp.einsum("bsk,nk->bsn",
                        x2.astype(jnp.bfloat16), weight2.astype(jnp.bfloat16),
                        preferred_element_type=jnp.float32) + bias2
    assert y2.shape == (batch2, seq2, out2)
    assert jnp.allclose(y2, y2_ref, atol=2e-3, rtol=2e-3)

    print("KERNEL_OK")
</pallas_src>

<mosaic_0001>
module attributes {stable_mosaic.version = 11 : i64} {
  func.func @_linear_kernel(%arg0: i32, %arg1: i32, %arg2: i32, %arg3: memref<16x128xbf16, #tpu.memory_space<vmem>>, %arg4: memref<128x128xbf16, #tpu.memory_space<vmem>>, %arg5: memref<1x128xf32, #tpu.memory_space<vmem>>, %arg6: memref<16x128xf32, #tpu.memory_space<vmem>>, %arg7: memref<16x128xf32, #tpu.memory_space<vmem>>) attributes {dimension_semantics = [#tpu.dimension_semantics<parallel>, #tpu.dimension_semantics<parallel>, #tpu.dimension_semantics<arbitrary>], iteration_bounds = array<i64: 1, 1, 1>, scalar_prefetch = 0 : i64, scratch_operands = 1 : i64, tpu.core_type = #tpu.core_type<tc>, window_params = [{transform_indices = @transform_0, window_bounds = array<i64: 16, 128>}, {transform_indices = @transform_1, window_bounds = array<i64: 128, 128>}, {transform_indices = @transform_2, window_bounds = array<i64: 1, 128>}, {transform_indices = @transform_3, window_bounds = array<i64: 16, 128>}]} {
    %c0 = arith.constant 0 : index
    %c0_0 = arith.constant 0 : index
    %0 = vector.load %arg3[%c0, %c0_0] : memref<16x128xbf16, #tpu.memory_space<vmem>>, vector<16x128xbf16>
    %c0_1 = arith.constant 0 : index
    %c0_2 = arith.constant 0 : index
    %1 = vector.load %arg4[%c0_1, %c0_2] : memref<128x128xbf16, #tpu.memory_space<vmem>>, vector<128x128xbf16>
    %cst = arith.constant dense<0.000000e+00> : vector<16x128xf32>
    %2 = tpu.matmul %0, %1, %cst {dimension_numbers = #tpu.dot_dimension_numbers<[1], [0], [0], [1], [0, 0, 1, 1], [], []>} : vector<16x128xbf16>, vector<128x128xbf16>, vector<16x128xf32> -> vector<16x128xf32>
    %c0_i32 = arith.constant 0 : i32
    %3 = arith.cmpi eq, %arg2, %c0_i32 : i32
    %4 = arith.extui %3 : i1 to i32
    %c0_i32_3 = arith.constant 0 : i32
    %5 = arith.cmpi ne, %4, %c0_i32_3 : i32
    scf.if %5 {
      %c0_8 = arith.constant 0 : index
      %c0_9 = arith.constant 0 : index
      %12 = vector.load %arg7[%c0_8, %c0_9] : memref<16x128xf32, #tpu.memory_space<vmem>>, vector<16x128xf32>
      tpu.vector_store %arg7[%c0_8, %c0_9], %2 {strides = array<i32>} : memref<16x128xf32, #tpu.memory_space<vmem>>, vector<16x128xf32>,
    } else {
    }
    %c0_i32_4 = arith.constant 0 : i32
    %6 = arith.cmpi sgt, %arg2, %c0_i32_4 : i32
    %7 = arith.extui %6 : i1 to i32
    %c0_i32_5 = arith.constant 0 : i32
    %8 = arith.cmpi ne, %7, %c0_i32_5 : i32
    scf.if %8 {
      %c0_8 = arith.constant 0 : index
      %c0_9 = arith.constant 0 : index
      %12 = vector.load %arg7[%c0_8, %c0_9] : memref<16x128xf32, #tpu.memory_space<vmem>>, vector<16x128xf32>
      %13 = arith.addf %12, %2 : vector<16x128xf32>
      %c0_10 = arith.constant 0 : index
      %c0_11 = arith.constant 0 : index
      %14 = vector.load %arg7[%c0_10, %c0_11] : memref<16x128xf32, #tpu.memory_space<vmem>>, vector<16x128xf32>
      tpu.vector_store %arg7[%c0_10, %c0_11], %13 {strides = array<i32>} : memref<16x128xf32, #tpu.memory_space<vmem>>, vector<16x128xf32>,
    } else {
    }
    %c0_i32_6 = arith.constant 0 : i32
    %9 = arith.cmpi eq, %arg2, %c0_i32_6 : i32
    %10 = arith.extui %9 : i1 to i32
    %c0_i32_7 = arith.constant 0 : i32
    %11 = arith.cmpi ne, %10, %c0_i32_7 : i32
    scf.if %11 {
      %c0_8 = arith.constant 0 : index
      %c0_9 = arith.constant 0 : index
      %12 = vector.load %arg7[%c0_8, %c0_9] : memref<16x128xf32, #tpu.memory_space<vmem>>, vector<16x128xf32>
      %c0_10 = arith.constant 0 : index
      %c0_11 = arith.constant 0 : index
      %13 = vector.load %arg5[%c0_10, %c0_11] : memref<1x128xf32, #tpu.memory_space<vmem>>, vector<1x128xf32>
      %14 = vector.broadcast %13 : vector<1x128xf32> to vector<16x128xf32>
      %15 = arith.addf %12, %14 : vector<16x128xf32>
      %c0_12 = arith.constant 0 : index
      %c0_13 = arith.constant 0 : index
      %16 = vector.load %arg6[%c0_12, %c0_13] : memref<16x128xf32, #tpu.memory_space<vmem>>, vector<16x128xf32>
      tpu.vector_store %arg6[%c0_12, %c0_13], %15 {strides = array<i32>} : memref<16x128xf32, #tpu.memory_space<vmem>>, vector<16x128xf32>,
    } else {
    }
    return
  }
  func.func @transform_0(%arg0: i32, %arg1: i32, %arg2: i32) -> (i32, i32) {
    %c0_i32 = arith.constant 0 : i32
    return %arg0, %arg2 : i32, i32
  }
  func.func @transform_1(%arg0: i32, %arg1: i32, %arg2: i32) -> (i32, i32) {
    %c0_i32 = arith.constant 0 : i32
    return %arg2, %arg1 : i32, i32
  }
  func.func @transform_2(%arg0: i32, %arg1: i32, %arg2: i32) -> (i32, i32) {
    %c0_i32 = arith.constant 0 : i32
    %c0_i32_0 = arith.constant 0 : i32
    return %c0_i32, %arg1 : i32, i32
  }
  func.func @transform_3(%arg0: i32, %arg1: i32, %arg2: i32) -> (i32, i32) {
    %c0_i32 = arith.constant 0 : i32
    return %arg0, %arg1 : i32, i32
  }
}

</mosaic_0001>

<llo_original>
// kernel: _linear_pallas.1
$region0: #{_linear_pallas.1}
  #allocation0 [shape = 'u32[]', space=smem, size = 0x4, offset = 0x4, fixed_abs, tag = 'smem constant byte address 0x4 - core index']
  #allocation1 [shape = 'u32[144,128]{1,0:T(1,128)}', space=vmem, size = 0x12000, scoped, tag = 'internal scratch']
  #allocation2 [shape = 'f32[16,128]{1,0:T(8,128)}', space=vmem, size = 0x2000, scoped, tag = 'scratch operand']
  %s0 = inlined_call_operand.hbm [shape: bf16[16,128], index: 0, kind: input, shape index: {}]
  %s1 = inlined_call_operand.hbm [shape: bf16[128,128], index: 1, kind: input, shape index: {}]
  %s2 = inlined_call_operand.vmem [shape: f32[1,128], index: 2, kind: input, shape index: {}]
  %s3 = inlined_call_operand.hbm [shape: f32[16,128], index: 3, kind: output, shape index: {}]
  %s4 = sld [smem:[#allocation0]]
  $region42: #{_linear_pallas.1} parent=0
    _
  %s6 = ssub.s32 1, %s4
  %s7 = scalar_select 0, %s6, %s4
  $region1: #{_linear_pallas.1} parent=0
    #allocation3 [shape = 'u8[4096]{0}', space=vmem, size = 0x1000, scoped, tag = 'input window, operand 0, single buffered']
    #allocation4 [shape = 's32[1]{0}', space=sflag, size = 0x4, scoped, tag = 'scoped memory for _linear_pallas.1']
    #allocation5 [shape = 's32[1]{0}', space=sflag, size = 0x4, scoped, tag = 'scoped memory for _linear_pallas.1']
    #allocation6 [shape = 'u8[32768]{0}', space=vmem, size = 0x8000, scoped, tag = 'input window, operand 1, single buffered']
    #allocation7 [shape = 's32[1]{0}', space=sflag, size = 0x4, scoped, tag = 'scoped memory for _linear_pallas.1']
    #allocation8 [shape = 'u8[8192]{0}', space=vmem, size = 0x2000, scoped, tag = 'output window, operand 0, single buffered']
    %8 = vsyncpa [#allocation4], 0
    %9 = vsyncpa [#allocation7], 0
    %10 = vsyncpa [#allocation5], 0
    // Predicated region
    $region2: #{_linear_pallas.1} parent=1 // pred_check
      _
    $region3: #{_linear_pallas.1} parent=1 // pred_check_branch
      %12 = sbr.rel (0) target = $region5
    $region4: #{_linear_pallas.1} parent=1 // pred_region
      %s14 = ssub.s32 128, 128
      %15 = vsyncadd [#allocation4], %s14
      %s16 = sshll.u32 [#allocation3], 4
      %s17 = int_to_ptr.vmem [resolvable:$true] %s16
      %22 = dma.hbm_to_vmem [thread:$0]  %s0, 128, %s17, [#allocation4], 64, 64, 4
    $region5: #{_linear_pallas.1} parent=1 // pred_fallthru
      _
    // Predicated region
    $region6: #{_linear_pallas.1} parent=1 // pred_check
      _
    $region7: #{_linear_pallas.1} parent=1 // pred_check_branch
      %24 = sbr.rel (0) target = $region9
    $region8: #{_linear_pallas.1} parent=1 // pred_region
      %s26 = ssub.s32 1024, 1024
      %27 = vsyncadd [#allocation7], %s26
      %s28 = sshll.u32 [#allocation6], 4
      %s29 = int_to_ptr.vmem [resolvable:$true] %s28
      %34 = dma.hbm_to_vmem [thread:$0]  %s1, 1024, %s29, [#allocation7], 64, 64, 4
    $region9: #{_linear_pallas.1} parent=1 // pred_fallthru
      _
    // Predicated region
    $region10: #{_linear_pallas.1} parent=1 // pred_check
      _
    $region11: #{_linear_pallas.1} parent=1 // pred_check_branch
      %36 = sbr.rel (0) target = $region13
    $region12: #{_linear_pallas.1} parent=1 // pred_region
      _
    $region13: #{_linear_pallas.1} parent=1 // pred_fallthru
      _
    // Predicated region
    $region14: #{_linear_pallas.1} parent=1 // pred_check
      _
    $region15: #{_linear_pallas.1} parent=1 // pred_check_branch
      %38 = sbr.rel (0) target = $region17
    $region16: #{_linear_pallas.1} parent=1 // pred_region
      %39 = dma.done [#allocation4], 128
    $region17: #{_linear_pallas.1} parent=1 // pred_fallthru
      _
    // Predicated region
    $region18: #{_linear_pallas.1} parent=1 // pred_check
      _
    $region19: #{_linear_pallas.1} parent=1 // pred_check_branch
      %41 = sbr.rel (0) target = $region21
    $region20: #{_linear_pallas.1} parent=1 // pred_region
      %42 = dma.done [#allocation7], 1024
    $region21: #{_linear_pallas.1} parent=1 // pred_fallthru
      _
    %v44 = vld [vmem:[#allocation3] sm:$0xf]
    %v45 = vld [vmem:[#allocation3 + $0x4] sm:$0xf]
    %v46 = vld [vmem:[#allocation6] sm:$0xf]
    %v47 = vld [vmem:[#allocation6 + $0x4] sm:$0xf]
    %v48 = vld [vmem:[#allocation6 + $0x8] sm:$0xf]
    %v49 = vld [vmem:[#allocation6 + $0xc] sm:$0xf]
    %v50 = vld [vmem:[#allocation6 + $0x10] sm:$0xf]
    %v51 = vld [vmem:[#allocation6 + $0x14] sm:$0xf]
    %v52 = vld [vmem:[#allocation6 + $0x18] sm:$0xf]
    %v53 = vld [vmem:[#allocation6 + $0x1c] sm:$0xf]
    %v54 = vld [vmem:[#allocation6 + $0x20] sm:$0xf]
    %v55 = vld [vmem:[#allocation6 + $0x24] sm:$0xf]
    %v56 = vld [vmem:[#allocation6 + $0x28] sm:$0xf]
    %v57 = vld [vmem:[#allocation6 + $0x2c] sm:$0xf]
    %v58 = vld [vmem:[#allocation6 + $0x30] sm:$0xf]
    %v59 = vld [vmem:[#allocation6 + $0x34] sm:$0xf]
    %v60 = vld [vmem:[#allocation6 + $0x38] sm:$0xf]
    %v61 = vld [vmem:[#allocation6 + $0x3c] sm:$0xf]
    %v64 = vunpack.c.l.b16 %v44
    %v65 = vunpack.c.l.b16 %v45
    %v66 = vpack.c.b16 %v65, %v64
    %v84 = vunpack.c.l.b16 %v46
    %v85 = vunpack.c.l.b16 %v47
    %v86 = vunpack.c.l.b16 %v48
    %v87 = vunpack.c.l.b16 %v49
    %v88 = vunpack.c.l.b16 %v50
    %v89 = vunpack.c.l.b16 %v51
    %v90 = vunpack.c.l.b16 %v52
    %v91 = vunpack.c.l.b16 %v53
    %v92 = vunpack.c.l.b16 %v54
    %v93 = vunpack.c.l.b16 %v55
    %v94 = vunpack.c.l.b16 %v56
    %v95 = vunpack.c.l.b16 %v57
    %v96 = vunpack.c.l.b16 %v58
    %v97 = vunpack.c.l.b16 %v59
    %v98 = vunpack.c.l.b16 %v60
    %v99 = vunpack.c.l.b16 %v61
    %v100 = vpack.c.b16 %v85, %v84
    %v101 = vpack.c.b16 %v87, %v86
    %v102 = vpack.c.b16 %v89, %v88
    %v103 = vpack.c.b16 %v91, %v90
    %v104 = vpack.c.b16 %v93, %v92
    %v105 = vpack.c.b16 %v95, %v94
    %v106 = vpack.c.b16 %v97, %v96
    %v107 = vpack.c.b16 %v99, %v98
    %116 = vmatprep.subr.bf16.mxu0 0
    %117 = vmatpush1.bf16.msra.mxu0 %v100
    %118 = vmatprep.subr.bf16.mxu0 0
    %119 = vmatpush1.bf16.msra.mxu0 %v101
    %120 = vmatprep.subr.bf16.mxu0 0
    %121 = vmatpush1.bf16.msra.mxu0 %v102
    %122 = vmatprep.subr.bf16.mxu0 0
    %123 = vmatpush1.bf16.msra.mxu0 %v103
    %124 = vmatprep.subr.bf16.mxu0 0
    %125 = vmatpush1.bf16.msra.mxu0 %v104
    %126 = vmatprep.subr.bf16.mxu0 0
    %127 = vmatpush1.bf16.msra.mxu0 %v105
    %128 = vmatprep.subr.bf16.mxu0 0
    %129 = vmatpush1.bf16.msra.mxu0 %v106
    %130 = vmatprep.subr.bf16.mxu0 0
    %131 = vmatpush1.bf16.msra.mxu0 %v107
    %132 = vmatprep.subr.bf16.mxu0 0
    %133 = vmatpush1.bf16.msra.mxu0 0
    %134 = vmatprep.subr.bf16.mxu0 0
    %135 = vmatpush1.bf16.msra.mxu0 0
    %136 = vmatprep.subr.bf16.mxu0 0
    %137 = vmatpush1.bf16.msra.mxu0 0
    %138 = vmatprep.subr.bf16.mxu0 0
    %139 = vmatpush1.bf16.msra.mxu0 0
    %140 = vmatprep.subr.bf16.mxu0 0
    %141 = vmatpush1.bf16.msra.mxu0 0
    %142 = vmatprep.subr.bf16.mxu0 0
    %143 = vmatpush1.bf16.msra.mxu0 0
    %144 = vmatprep.subr.bf16.mxu0 0
    %145 = vmatpush1.bf16.msra.mxu0 0
    %146 = vmatprep.subr.bf16.mxu0 0
    %147 = vmatpush1.bf16.msra.mxu0 0
    %148 = vmatprep.mubr.bf16.mxu0 0
    %149 = vmatmul.mubr.bf16.gmra.mrb[0].mxu0 %v66
    %v150 = vpop.f32.mrb[0].mxu0
    %v151 = vadd.f32 0.0, %v150
    %v152 = vpop.f32.mrb[0].mxu0
    %v153 = vpop.f32.mrb[0].mxu0
    %v154 = vadd.f32 0.0, %v153
    %v155 = vpop.f32.mrb[0].mxu0
    %156 = vdwg.mxu0
    %p157 = scmp.eq.s32.totalorder 0, 0
    // Predicated region
    $region22: #{_linear_pallas.1} parent=1 // pred_check
      %p158 = pneg %p157
    $region23: #{_linear_pallas.1} parent=1 // pred_check_branch
      %160 = sbr.rel (%p158) target = $region25
    $region24: #{_linear_pallas.1} parent=1 // pred_region
      %161 = vst [vmem:[#allocation2] sm:$0xff] %v151
      %162 = vst [vmem:[#allocation2 + $0x8] sm:$0xff] %v154
    $region25: #{_linear_pallas.1} parent=1 // pred_fallthru
      _
    %p163 = scmp.gt.s32.totalorder 0, 0
    // Predicated region
    $region26: #{_linear_pallas.1} parent=1 // pred_check
      %p164 = pneg %p163
    $region27: #{_linear_pallas.1} parent=1 // pred_check_branch
      %166 = sbr.rel (%p164) target = $region29
    $region28: #{_linear_pallas.1} parent=1 // pred_region
      %v167 = vld [vmem:[#allocation2] sm:$0xff]
      %v168 = vld [vmem:[#allocation2 + $0x8] sm:$0xff]
      %v169 = vadd.f32 %v167, %v151
      %v170 = vadd.f32 %v168, %v154
      %171 = vst [vmem:[#allocation2] sm:$0xff] %v169
      %172 = vst [vmem:[#allocation2 + $0x8] sm:$0xff] %v170
    $region29: #{_linear_pallas.1} parent=1 // pred_fallthru
      _
    // Predicated region
    $region30: #{_linear_pallas.1} parent=1 // pred_check
      %p173 = pneg %p157
    $region31: #{_linear_pallas.1} parent=1 // pred_check_branch
      %175 = sbr.rel (%p173) target = $region33
    $region32: #{_linear_pallas.1} parent=1 // pred_region
      %v176 = vld [vmem:[#allocation2] sm:$0xff]
      %v177 = vld [vmem:[#allocation2 + $0x8] sm:$0xff]
      %v178 = vld [vmem:[%s2] sm:$0x1]
      %v180 = vlaneseq
      %v181 = vshrl.u32 %v180, 7
      %v182 = vsub.s32 0, %v181
      %v183 = vrot.slane %v178, %v182
      %v185 = vadd.f32 %v176, %v183
      %v186 = vadd.f32 %v177, %v183
      %187 = vst [vmem:[#allocation8] sm:$0xff] %v185
      %188 = vst [vmem:[#allocation8 + $0x8] sm:$0xff] %v186
    $region33: #{_linear_pallas.1} parent=1 // pred_fallthru
      _
    // Predicated region
    $region34: #{_linear_pallas.1} parent=1 // pred_check
      _
    $region35: #{_linear_pallas.1} parent=1 // pred_check_branch
      %190 = sbr.rel (0) target = $region37
    $region36: #{_linear_pallas.1} parent=1 // pred_region
      %s192 = ssub.s32 256, 256
      %193 = vsyncadd [#allocation5], %s192
      %s194 = sshll.u32 [#allocation8], 4
      %s195 = int_to_ptr.vmem [resolvable:$true] %s194
      %200 = dma.vmem_to_hbm [thread:$0]  %s195, 256, %s3, [#allocation5], 128, 128, 8
    $region37: #{_linear_pallas.1} parent=1 // pred_fallthru
      _
    // Predicated region
    $region38: #{_linear_pallas.1} parent=1 // pred_check
      _
    $region39: #{_linear_pallas.1} parent=1 // pred_check_branch
      %202 = sbr.rel (0) target = $region41
    $region40: #{_linear_pallas.1} parent=1 // pred_region
      %203 = dma.done [#allocation5], 256
    $region41: #{_linear_pallas.1} parent=1 // pred_fallthru
      _
    %204 = vsyncpa [#allocation4], 1
    %205 = vsyncpa [#allocation7], 1
    %206 = vsyncpa [#allocation5], 1

</llo_original>
